<compile_context>
chip_gen: v6e
topology: v6e:2x2x1
jax: 0.10.0
libtpu: 0.0.40
codegen_flags: <defaults>
</compile_context>

<pallas_src>
import jax
import jax.numpy as jnp
from jax.experimental import pallas as pl
from jax.experimental.pallas import tpu as pltpu

_LANE = 128
_SUBLANE = 8
_NEG_PAD = -1e30          # pad-column bias: exp underflows to exactly 0 in f32
_VMEM_BUDGET = 40 << 20   # conservative buffer budget, fits v5e/v6e/v7x


def _round_up(x, m):
    return (x + m - 1) // m * m


def _categorical_kernel(x_ref, w_ref, b_ref, logits_ref):
    """Fused linear + log-softmax for one batch tile.

    x_ref: [tb, K] bf16, w_ref: [K, N_pad] bf16, b_ref: [1, N_pad] f32.
    Writes normalized logits (raw - logsumexp(raw)) in f32.
    """
    raw = jnp.dot(x_ref[...], w_ref[...],
                  preferred_element_type=jnp.float32) + b_ref[...]
    m = jnp.max(raw, axis=-1, keepdims=True)
    shifted = raw - m
    s = jnp.sum(jnp.exp(shifted), axis=-1, keepdims=True)
    logits_ref[...] = shifted - jnp.log(s)


def categorical_forward(x, w_t, b, *, vmem_budget_bytes=_VMEM_BUDGET,
                        max_tile_b=512):
    """x: [B, K]; w_t: [K, N_pad] bf16 (pre-padded W.T); b: [1, N_pad] f32.

    Returns normalized logits [B, N_pad] f32 (pad columns ~= -1e30).
    """
    B, K = x.shape
    K2, N_pad = w_t.shape
    assert K == K2 and N_pad % _LANE == 0
    assert b.shape == (1, N_pad)

    # Halve x DMA bytes + native bf16 MXU rate (f32 accumulation in-kernel).
    x = x.astype(jnp.bfloat16)

    # ---- VMEM-budgeted batch tile ------------------------------------------
    # Resident weight/bias blocks are budgeted double-buffered (default
    # BlockSpec pipelining); x and the logits output are double-buffered per
    # batch tile.
    weight_bytes = 2 * (K * N_pad * 2 + N_pad * 4)
    per_row_bytes = 2 * (K * 2) + 2 * (N_pad * 4)
    avail = vmem_budget_bytes - weight_bytes
    # TODO(synk): add an N-tiled online-softmax fallback for vocab-scale heads
    # whose weights do not fit VMEM (not needed for RL action heads).
    assert avail >= _SUBLANE * per_row_bytes, (
        "Categorical head too large for the resident-weight kernel")
    tb_cap = min(max_tile_b, avail // per_row_bytes)
    tb_cap = max(_SUBLANE, (tb_cap // _SUBLANE) * _SUBLANE)

    B8 = _round_up(B, _SUBLANE)
    n_tiles = pl.cdiv(B8, tb_cap)
    if B8 >= 2 * _SUBLANE:
        n_tiles = max(n_tiles, 2)          # feed both TensorCores on v7x
    tb = _round_up(pl.cdiv(B8, n_tiles), _SUBLANE)   # balanced -> minimal waste
    n_tiles = pl.cdiv(B8, tb)
    B_pad = n_tiles * tb

    if B_pad != B:
        x = jnp.pad(x, ((0, B_pad - B), (0, 0)))

    vmem_needed = weight_bytes + tb * per_row_bytes
    vmem_limit = int(min(max(vmem_needed + (4 << 20), 16 << 20), 64 << 20))

    cost = pl.CostEstimate(
        flops=2 * B_pad * K * N_pad + 4 * B_pad * N_pad,
        transcendentals=B_pad * N_pad + B_pad,
        bytes_accessed=2 * B_pad * K + 2 * K * N_pad + 4 * N_pad
                       + 4 * B_pad * N_pad,
    )

    logits = pl.pallas_call(
        _categorical_kernel,
        out_shape=jax.ShapeDtypeStruct((B_pad, N_pad), jnp.float32),
        grid_spec=pl.GridSpec(
            grid=(n_tiles,),
            in_specs=[
                pl.BlockSpec((tb, K), lambda i: (i, 0)),      # batch-streamed
                pl.BlockSpec((K, N_pad), lambda i: (0, 0)),   # weights resident
                pl.BlockSpec((1, N_pad), lambda i: (0, 0)),   # bias resident
            ],
            out_specs=pl.BlockSpec((tb, N_pad), lambda i: (i, 0)),
        ),
        compiler_params=pltpu.CompilerParams(
            dimension_semantics=("parallel",),
            vmem_limit_bytes=vmem_limit),
        cost_estimate=cost,
    )(x, w_t, b)

    if B_pad != B:
        logits = logits[:B]    # contiguous row slice only; N stays padded
    return logits


class FixedCategoricalJax:
    """Mirrors FixedCategorical on top of padded, normalized logits.

    Pad columns carry logit ~ -1e30 (prob exactly 0), so argmax/entropy/
    sampling/log_prob are unaffected and no slice copy is needed.
    """

    def __init__(self, logits):
        self.logits = logits          # [B, N_pad], already normalized
        self._probs = None

    @property
    def probs(self):
        if self._probs is None:
            self._probs = jnp.exp(self.logits)   # exact softmax; pads are 0
        return self._probs

    def mode(self):
        return jnp.argmax(self.logits, axis=-1, keepdims=True)      # [B, 1]

    def entropy(self):
        ent = -jnp.sum(self.probs * self.logits, axis=-1)
        return ent[..., None]                                        # [B, 1]

    def log_probs(self, actions):
        a = actions.squeeze(-1)[..., None]                           # [B, 1]
        return jnp.take_along_axis(self.logits, a, axis=-1)          # [B, 1]

    def sample(self, key):
        s = jax.random.categorical(key, self.logits, axis=-1)
        return s[..., None]                                          # [B, 1]


def orthogonal_init(key, rows, cols, gain):
    """Deterministic orthogonal init (QR based, like nn.init.orthogonal_)."""
    n = max(rows, cols)
    a = jax.random.normal(key, (n, n), dtype=jnp.float32)
    q, r = jnp.linalg.qr(a)
    q = q * jnp.sign(jnp.diag(r))[None, :]
    return gain * q[:rows, :cols]


class CategoricalHead:
    """JAX/Pallas equivalent of the PyTorch `Categorical` module."""

    def __init__(self, num_inputs, num_outputs, gain=0.01, key=None):
        if key is None:
            key = jax.random.PRNGKey(0)
        self.num_inputs = num_inputs
        self.num_outputs = num_outputs
        n_pad = _round_up(max(num_outputs, _LANE), _LANE)
        self.n_pad = n_pad

        # PyTorch Linear weight is [num_outputs, num_inputs]; we store W.T,
        # padded + cast ONCE here (static across forward calls).
        w = orthogonal_init(key, num_outputs, num_inputs, gain)      # [N, K]
        w_t = jnp.asarray(w.T, dtype=jnp.float32)                    # [K, N]
        self.w_t = jnp.pad(
            w_t, ((0, 0), (0, n_pad - num_outputs))).astype(jnp.bfloat16)
        b = jnp.zeros((1, num_outputs), dtype=jnp.float32)
        self.b = jnp.pad(b, ((0, 0), (0, n_pad - num_outputs)),
                         constant_values=_NEG_PAD)                   # [1, n_pad]

    def __call__(self, x):
        logits = categorical_forward(x, self.w_t, self.b)
        return FixedCategoricalJax(logits)

    @property
    def output_size(self) -> int:
        return 1


if __name__ == "__main__":
    key = jax.random.PRNGKey(0)
    k_x, k_w = jax.random.split(key)

    B, num_inputs, num_outputs = 8, 32, 16
    x = jax.random.normal(k_x, (B, num_inputs), dtype=jnp.float32)

    head = CategoricalHead(num_inputs, num_outputs, gain=0.01, key=k_w)
    dist = head(x)

    # Exercise the distribution API (pure-JAX glue on the kernel output).
    mode = dist.mode()                       # [B, 1] int
    ent = dist.entropy()                     # [B, 1] f32
    lp = dist.log_probs(mode)                # [B, 1] f32
    samp = dist.sample(jax.random.PRNGKey(1))

    jax.block_until_ready((dist.logits, dist.probs, mode, ent, lp, samp))

    # ---- checks --------------------------------------------------------------
    N_pad = head.n_pad

    # Reference with matching precision (bf16 operands, f32 accumulation).
    raw_ref = jnp.dot(x.astype(jnp.bfloat16), head.w_t,
                      preferred_element_type=jnp.float32) + head.b
    logits_ref = raw_ref - jax.scipy.special.logsumexp(
        raw_ref, axis=-1, keepdims=True)
    probs_ref = jax.nn.softmax(raw_ref, axis=-1)
    assert dist.logits.shape == (B, N_pad)
    assert jnp.allclose(dist.logits, logits_ref, atol=1e-5), "logits mismatch"
    assert jnp.allclose(dist.probs, probs_ref, atol=1e-5), "probs mismatch"

    # Semantic check against a pure-f32 torch-style reference (bf16 rounding
    # only), on the valid columns.
    w_f32 = head.w_t[:, :num_outputs].astype(jnp.float32)
    raw_f32 = x @ w_f32
    logits_f32 = raw_f32 - jax.scipy.special.logsumexp(
        raw_f32, axis=-1, keepdims=True)
    assert jnp.allclose(dist.logits[:, :num_outputs], logits_f32, atol=5e-3)

    # Pad columns: prob exactly 0, never sampled / never the mode.
    assert float(jnp.max(dist.probs[:, num_outputs:])) == 0.0
    assert jnp.all(mode < num_outputs) and jnp.all(samp < num_outputs)
    assert jnp.allclose(jnp.sum(dist.probs, axis=-1), 1.0, atol=1e-3)

    print("KERNEL_OK")
</pallas_src>

<mosaic_0001>
module attributes {stable_mosaic.version = 11 : i64} {
  func.func @_categorical_kernel(%arg0: i32, %arg1: memref<8x32xbf16, #tpu.memory_space<vmem>>, %arg2: memref<32x128xbf16, #tpu.memory_space<vmem>>, %arg3: memref<1x128xf32, #tpu.memory_space<vmem>>, %arg4: memref<8x128xf32, #tpu.memory_space<vmem>>) attributes {dimension_semantics = [#tpu.dimension_semantics<parallel>], iteration_bounds = array<i64: 1>, scalar_prefetch = 0 : i64, scratch_operands = 0 : i64, tpu.core_type = #tpu.core_type<tc>, window_params = [{transform_indices = @transform_0, window_bounds = array<i64: 8, 32>}, {pipeline_mode = #tpu.pipeline_mode<synchronous>, transform_indices = @transform_1, window_bounds = array<i64: 32, 128>}, {pipeline_mode = #tpu.pipeline_mode<synchronous>, transform_indices = @transform_2, window_bounds = array<i64: 1, 128>}, {transform_indices = @transform_3, window_bounds = array<i64: 8, 128>}]} {
    %c0 = arith.constant 0 : index
    %c0_0 = arith.constant 0 : index
    %0 = vector.load %arg1[%c0, %c0_0] : memref<8x32xbf16, #tpu.memory_space<vmem>>, vector<8x32xbf16>
    %c0_1 = arith.constant 0 : index
    %c0_2 = arith.constant 0 : index
    %1 = vector.load %arg2[%c0_1, %c0_2] : memref<32x128xbf16, #tpu.memory_space<vmem>>, vector<32x128xbf16>
    %cst = arith.constant dense<0.000000e+00> : vector<8x128xf32>
    %2 = tpu.matmul %0, %1, %cst {dimension_numbers = #tpu.dot_dimension_numbers<[1], [0], [0], [1], [0, 0, 1, 1], [], []>} : vector<8x32xbf16>, vector<32x128xbf16>, vector<8x128xf32> -> vector<8x128xf32>
    %c0_3 = arith.constant 0 : index
    %c0_4 = arith.constant 0 : index
    %3 = vector.load %arg3[%c0_3, %c0_4] : memref<1x128xf32, #tpu.memory_space<vmem>>, vector<1x128xf32>
    %4 = vector.broadcast %3 : vector<1x128xf32> to vector<8x128xf32>
    %5 = arith.addf %2, %4 : vector<8x128xf32>
    %cst_5 = arith.constant dense<0xFF800000> : vector<8xf32>
    %6 = vector.multi_reduction <maximumf>, %5, %cst_5 [1] : vector<8x128xf32> to vector<8xf32>
    %7 = vector.shape_cast %6 : vector<8xf32> to vector<8x1xf32>
    %8 = vector.broadcast %7 : vector<8x1xf32> to vector<8x128xf32>
    %9 = arith.subf %5, %8 : vector<8x128xf32>
    %10 = math.exp %9 : vector<8x128xf32>
    %cst_6 = arith.constant dense<0.000000e+00> : vector<8xf32>
    %11 = vector.multi_reduction <add>, %10, %cst_6 [1] : vector<8x128xf32> to vector<8xf32>
    %12 = vector.shape_cast %11 : vector<8xf32> to vector<8x1xf32>
    %13 = math.log %12 : vector<8x1xf32>
    %14 = vector.broadcast %13 : vector<8x1xf32> to vector<8x128xf32>
    %15 = arith.subf %9, %14 : vector<8x128xf32>
    %c0_7 = arith.constant 0 : index
    %c0_8 = arith.constant 0 : index
    %16 = vector.load %arg4[%c0_7, %c0_8] : memref<8x128xf32, #tpu.memory_space<vmem>>, vector<8x128xf32>
    tpu.vector_store %arg4[%c0_7, %c0_8], %15 {strides = array<i32>} : memref<8x128xf32, #tpu.memory_space<vmem>>, vector<8x128xf32>,
    return
  }
  func.func @transform_0(%arg0: i32) -> (i32, i32) {
    %c0_i32 = arith.constant 0 : i32
    %c0_i32_0 = arith.constant 0 : i32
    return %arg0, %c0_i32 : i32, i32
  }
  func.func @transform_1(%arg0: i32) -> (i32, i32) {
    %c0_i32 = arith.constant 0 : i32
    %c0_i32_0 = arith.constant 0 : i32
    %c0_i32_1 = arith.constant 0 : i32
    return %c0_i32, %c0_i32_0 : i32, i32
  }
  func.func @transform_2(%arg0: i32) -> (i32, i32) {
    %c0_i32 = arith.constant 0 : i32
    %c0_i32_0 = arith.constant 0 : i32
    %c0_i32_1 = arith.constant 0 : i32
    return %c0_i32, %c0_i32_0 : i32, i32
  }
  func.func @transform_3(%arg0: i32) -> (i32, i32) {
    %c0_i32 = arith.constant 0 : i32
    %c0_i32_0 = arith.constant 0 : i32
    return %arg0, %c0_i32 : i32, i32
  }
}

</mosaic_0001>

<llo_original>
// kernel: tpu_custom_call.1
$region0: #{tpu_custom_call.1}
  #allocation0 [shape = 'u32[]', space=smem, size = 0x4, offset = 0x4, fixed_abs, tag = 'smem constant byte address 0x4 - core index']
  #allocation1 [shape = 'u32[144,128]{1,0:T(1,128)}', space=vmem, size = 0x12000, scoped, tag = 'internal scratch']
  %s0 = inlined_call_operand.hbm [shape: bf16[8,32], index: 0, kind: input, shape index: {}]
  %s1 = inlined_call_operand.hbm [shape: bf16[32,128], index: 1, kind: input, shape index: {}]
  %s2 = inlined_call_operand.vmem [shape: f32[1,128], index: 2, kind: input, shape index: {}]
  %s3 = inlined_call_operand.hbm [shape: f32[8,128], index: 3, kind: output, shape index: {}]
  %s4 = sld [smem:[#allocation0]]
  $region30: #{tpu_custom_call.1} parent=0
    _
  %s6 = ssub.s32 1, %s4
  %s7 = scalar_select 0, %s6, %s4
  $region1: #{tpu_custom_call.1} parent=0
    #allocation2 [shape = 'u8[2048]{0}', space=vmem, size = 0x800, scoped, tag = 'input window, operand 0, single buffered']
    #allocation3 [shape = 's32[1]{0}', space=sflag, size = 0x4, scoped, tag = 'scoped memory for tpu_custom_call.1']
    #allocation4 [shape = 's32[1]{0}', space=sflag, size = 0x4, scoped, tag = 'scoped memory for tpu_custom_call.1']
    #allocation5 [shape = 'u8[8192]{0}', space=vmem, size = 0x2000, scoped, tag = 'input window, operand 1, single buffered']
    #allocation6 [shape = 's32[1]{0}', space=sflag, size = 0x4, scoped, tag = 'scoped memory for tpu_custom_call.1']
    #allocation7 [shape = 'u8[4096]{0}', space=vmem, size = 0x1000, scoped, tag = 'output window, operand 0, single buffered']
    %8 = vsyncpa [#allocation3], 0
    %9 = vsyncpa [#allocation6], 0
    %10 = vsyncpa [#allocation4], 0
    // Predicated region
    $region2: #{tpu_custom_call.1} parent=1 // pred_check
      _
    $region3: #{tpu_custom_call.1} parent=1 // pred_check_branch
      %12 = sbr.rel (0) target = $region5
    $region4: #{tpu_custom_call.1} parent=1 // pred_region
      %s14 = ssub.s32 64, 64
      %15 = vsyncadd [#allocation3], %s14
      %s17 = sshll.u32 [#allocation2], 4
      %s18 = int_to_ptr.vmem [resolvable:$true] %s17
      %20 = dma.hbm_to_vmem [thread:$0]  %s0, 64, %s18, [#allocation3]
    $region5: #{tpu_custom_call.1} parent=1 // pred_fallthru
      _
    // Predicated region
    $region6: #{tpu_custom_call.1} parent=1 // pred_check
      _
    $region7: #{tpu_custom_call.1} parent=1 // pred_check_branch
      %22 = sbr.rel (0) target = $region9
    $region8: #{tpu_custom_call.1} parent=1 // pred_region
      %s24 = ssub.s32 256, 256
      %25 = vsyncadd [#allocation6], %s24
      %s26 = sshll.u32 [#allocation5], 4
      %s27 = int_to_ptr.vmem [resolvable:$true] %s26
      %32 = dma.hbm_to_vmem [thread:$0]  %s1, 256, %s27, [#allocation6], 64, 64, 4
    $region9: #{tpu_custom_call.1} parent=1 // pred_fallthru
      _
    // Predicated region
    $region10: #{tpu_custom_call.1} parent=1 // pred_check
      _
    $region11: #{tpu_custom_call.1} parent=1 // pred_check_branch
      %34 = sbr.rel (0) target = $region13
    $region12: #{tpu_custom_call.1} parent=1 // pred_region
      _
    $region13: #{tpu_custom_call.1} parent=1 // pred_fallthru
      _
    // Predicated region
    $region14: #{tpu_custom_call.1} parent=1 // pred_check
      _
    $region15: #{tpu_custom_call.1} parent=1 // pred_check_branch
      %36 = sbr.rel (0) target = $region17
    $region16: #{tpu_custom_call.1} parent=1 // pred_region
      %37 = dma.done [#allocation3], 64
    $region17: #{tpu_custom_call.1} parent=1 // pred_fallthru
      _
    // Predicated region
    $region18: #{tpu_custom_call.1} parent=1 // pred_check
      _
    $region19: #{tpu_custom_call.1} parent=1 // pred_check_branch
      %39 = sbr.rel (0) target = $region21
    $region20: #{tpu_custom_call.1} parent=1 // pred_region
      %40 = dma.done [#allocation6], 256
    $region21: #{tpu_custom_call.1} parent=1 // pred_fallthru
      _
    %v42 = vld [vmem:[#allocation2] sm:$0xf]
    %v43 = vld [vmem:[#allocation5] sm:$0xf]
    %v44 = vld [vmem:[#allocation5 + $0x4] sm:$0xf]
    %v45 = vld [vmem:[#allocation5 + $0x8] sm:$0xf]
    %v46 = vld [vmem:[#allocation5 + $0xc] sm:$0xf]
    %v47 = vld [vmem:[%s2] sm:$0x1]
    %v49 = vlaneseq
    %v50 = vshrl.u32 %v49, 7
    %v51 = vsub.s32 0, %v50
    %v52 = vrot.slane %v47, %v51
    %v58 = vunpack.c.l.b16 %v43
    %v59 = vunpack.c.l.b16 %v44
    %v60 = vunpack.c.l.b16 %v45
    %v61 = vunpack.c.l.b16 %v46
    %v62 = vpack.c.b16 %v59, %v58
    %v63 = vpack.c.b16 %v61, %v60
    %vm66 = vcmask 261120
    %v68 = vsel %vm66, %v42, 0
    %70 = vmatprep.subr.bf16.mxu0 0
    %71 = vmatpush1.bf16.msra.mxu0 0
    %72 = vmatprep.subr.bf16.mxu0 0
    %73 = vmatpush1.bf16.msra.mxu0 0
    %74 = vmatprep.subr.bf16.mxu0 0
    %75 = vmatpush1.bf16.msra.mxu0 0
    %76 = vmatprep.subr.bf16.mxu0 0
    %77 = vmatpush1.bf16.msra.mxu0 0
    %78 = vmatprep.subr.bf16.mxu0 0
    %79 = vmatpush1.bf16.msra.mxu0 0
    %80 = vmatprep.subr.bf16.mxu0 0
    %81 = vmatpush1.bf16.msra.mxu0 0
    %82 = vmatprep.subr.bf16.mxu0 0
    %83 = vmatpush1.bf16.msra.mxu0 %v63
    %84 = vmatprep.subr.bf16.mxu0 0
    %85 = vmatpush1.bf16.msra.mxu0 %v62
    %86 = vmatprep.subr.bf16.mxu0 0
    %87 = vmatpush2.bf16.msra.mxu0 0
    %88 = vmatprep.subr.bf16.mxu0 0
    %89 = vmatpush2.bf16.msra.mxu0 0
    %90 = vmatprep.subr.bf16.mxu0 0
    %91 = vmatpush2.bf16.msra.mxu0 0
    %92 = vmatprep.subr.bf16.mxu0 0
    %93 = vmatpush2.bf16.msra.mxu0 0
    %94 = vmatprep.subr.bf16.mxu0 0
    %95 = vmatpush2.bf16.msra.mxu0 0
    %96 = vmatprep.subr.bf16.mxu0 0
    %97 = vmatpush2.bf16.msra.mxu0 0
    %98 = vmatprep.subr.bf16.mxu0 0
    %99 = vmatpush2.bf16.msra.mxu0 0
    %100 = vmatprep.subr.bf16.mxu0 0
    %101 = vmatpush2.bf16.msra.mxu0 0
    %102 = vmatprep.mubr.bf16.mxu0 0
    %103 = vmatmul.mubr.bf16.gmra.mxu0 %v68
    %v104 = vpop.f32.mrf.mxu0
    %v105 = vadd.f32 %v52, %v104
    %v106 = vpop.f32.mrf.mxu0
    %v107 = vpop.f32.mrf.mxu0
    %v108 = vpop.f32.mrf.mxu0
    %109 = vdwg.mxu0
    %110 = vmax.xlane.f32.xlu0 %v105
    %v111 = vpop.xlane.xlu0 %110
    %v112 = vsub.f32 %v105, %v111
    %v113 = vmul.f32 %v112, 1.442695
    %v114 = vpow.pop %v113
    %115 = vadd.xlane.f32.xlu0 %v114
    %v116 = vpop.xlane.xlu0 %115
    %v117 = vlog2.pop %v116
    %v118 = vmul.f32 %v117, 0.6931472
    %v119 = vsub.f32 %v112, %v118
    %120 = vst [vmem:[#allocation7] sm:$0xff] %v119
    // Predicated region
    $region22: #{tpu_custom_call.1} parent=1 // pred_check
      _
    $region23: #{tpu_custom_call.1} parent=1 // pred_check_branch
      %122 = sbr.rel (0) target = $region25
    $region24: #{tpu_custom_call.1} parent=1 // pred_region
      %s124 = ssub.s32 128, 128
      %125 = vsyncadd [#allocation4], %s124
      %s127 = sshll.u32 [#allocation7], 4
      %s128 = int_to_ptr.vmem [resolvable:$true] %s127
      %130 = dma.vmem_to_hbm [thread:$0]  %s128, 128, %s3, [#allocation4]
    $region25: #{tpu_custom_call.1} parent=1 // pred_fallthru
      _
    // Predicated region
    $region26: #{tpu_custom_call.1} parent=1 // pred_check
      _
    $region27: #{tpu_custom_call.1} parent=1 // pred_check_branch
      %132 = sbr.rel (0) target = $region29
    $region28: #{tpu_custom_call.1} parent=1 // pred_region
      %133 = dma.done [#allocation4], 128
    $region29: #{tpu_custom_call.1} parent=1 // pred_fallthru
      _
    %134 = vsyncpa [#allocation3], 1
    %135 = vsyncpa [#allocation6], 1
    %136 = vsyncpa [#allocation4], 1

</llo_original>
